<compile_context>
chip_gen: v7x
topology: tpu7x:2x2x1
jax: 0.10.0
libtpu: 0.0.40
codegen_flags: <defaults>
</compile_context>

<pallas_src>
import jax
import jax.numpy as jnp
from jax.experimental import pallas as pl
from jax.experimental.pallas import tpu as pltpu

LN_EPS = 1e-5
_INV_SQRT2 = 0.7071067811865476
_SQRT_2_OVER_PI = 0.7978845608028654


def _gelu_tanh(x):
    # tanh-form GELU: ~7 VALU ops + one EUP tanh per element.
    return 0.5 * x * (1.0 + jnp.tanh(_SQRT_2_OVER_PI * (x + 0.044715 * x * x * x)))


def patch_embed_kernel(p_ref, w_ref, b_ref, g_ref, beta_ref, o_ref):
    # p_ref: (TM, K) bf16 patch rows; w_ref: (K, D) bf16; b/g/beta: (1, D) f32;
    # o_ref: (TM, D) bf16.
    y = jnp.dot(p_ref[...], w_ref[...], preferred_element_type=jnp.float32)
    y = y + b_ref[...]                                    # (TM, D) f32

    # LayerNorm over embed dim (eps=1e-5, biased variance), single pass:
    # the E[y] and E[y^2] reductions are independent so the XLUs can overlap them.
    mu = jnp.mean(y, axis=-1, keepdims=True)
    ms = jnp.mean(y * y, axis=-1, keepdims=True)
    var = jnp.maximum(ms - mu * mu, 0.0)
    yn = (y - mu) * jax.lax.rsqrt(var + LN_EPS) * g_ref[...] + beta_ref[...]

    o_ref[...] = _gelu_tanh(yn).astype(o_ref.dtype)


def patch_embed_forward(x_nchw, params, patch_size, *, block_m=512, channels_last=False):
    """PatchEmbed forward.

    x_nchw: (B, C, H, W) f32  ->  (B, D, H//P, W//P) bf16  (or (B, Hp, Wp, D) bf16
    when channels_last=True, which skips the final HBM permute entirely).
    """
    B, C, H, W = x_nchw.shape
    P = patch_size
    assert H % P == 0 and W % P == 0
    Hp, Wp = H // P, W // P
    K = C * P * P
    D = params["w"].shape[1]

    # im2row producer (pure layout + bf16 cast).  With allow_input_fusion below,
    # XLA is allowed to fuse this into the pallas_call operand instead of writing
    # a separate `patches` array to HBM.
    xr = x_nchw.reshape(B, C, Hp, P, Wp, P)
    xr = jnp.transpose(xr, (0, 2, 4, 1, 3, 5))            # (B, Hp, Wp, C, P, P)
    patches = xr.reshape(B * Hp * Wp, K).astype(jnp.bfloat16)

    w = params["w"].astype(jnp.bfloat16)                  # bf16 MXU operand
    b = params["b"].astype(jnp.float32)
    g = params["g"].astype(jnp.float32)
    beta = params["beta"].astype(jnp.float32)

    # Token tile: big (default 512), multiple of 16 (bf16 sublane packing), but
    # capped so the grid keeps >=2 steps (both v7x TensorCores get work).
    N = B * Hp * Wp
    tm = min(block_m, N)
    if N > 16:
        tm = min(tm, -(-N // 2))                          # ceil(N / 2)
    tm = max(16, ((tm + 15) // 16) * 16)
    grid = (pl.cdiv(N, tm),)                              # ragged tail: masked by Pallas

    def rep(shape):
        # Whole array, revisited (same block index) every grid step -> DMA elided
        # after step 0.  (Could add pipeline_mode=pl.Buffered(1) to drop the second
        # weight buffer if VMEM ever gets tight at very large TM.)
        return pl.BlockSpec(shape, lambda i: (0,) * len(shape))

    out = pl.pallas_call(
        patch_embed_kernel,
        out_shape=jax.ShapeDtypeStruct((N, D), jnp.bfloat16),   # bf16 store: -25% kernel HBM
        grid=grid,
        in_specs=[
            pl.BlockSpec((tm, K), lambda i: (i, 0)),      # patch-row tile per step
            rep((K, D)),                                  # projection weight
            rep((1, D)),                                  # projection bias
            rep((1, D)), rep((1, D)),                     # LN gamma / beta
        ],
        out_specs=pl.BlockSpec((tm, D), lambda i: (i, 0)),
        compiler_params=pltpu.CompilerParams(
            dimension_semantics=("parallel",),
            # Let XLA fuse the im2row transpose/reshape/cast producer into the
            # patches operand (review item 1, option a).  Harmless if not fused.
            allow_input_fusion=[True, False, False, False, False],
            vmem_limit_bytes=32 * 1024 * 1024,            # v5e default is only 16 MiB
        ),
    )(patches, w, b, g, beta)

    out = out.reshape(B, Hp, Wp, D)
    if channels_last:
        return out                                        # NHWC: no permute round trip
    # Drop-in PyTorch layout (NCHW); permute done on the bf16 tensor (half the bytes).
    return jnp.transpose(out, (0, 3, 1, 2))


def make_params(key, in_chans, embed_dim, patch_size):
    """Synthetic params matching PatchEmbed(patch_size, in_chans, embed_dim).

    PyTorch -> kernel layout:
      proj.weight (D, C, P, P) -> w (C*P*P, D), w[c*P*P + kh*P + kw, d] = proj.weight[d, c, kh, kw]
      proj.bias   (D,)         -> b    (1, D)
      norm.weight/bias (D,)    -> g / beta (1, D)
    """
    K = in_chans * patch_size * patch_size
    k0, k1, k2, k3 = jax.random.split(key, 4)
    return dict(
        w=0.02 * jax.random.normal(k0, (K, embed_dim), jnp.float32),
        b=0.02 * jax.random.normal(k1, (1, embed_dim), jnp.float32),
        g=1.0 + 0.05 * jax.random.normal(k2, (1, embed_dim), jnp.float32),
        beta=0.05 * jax.random.normal(k3, (1, embed_dim), jnp.float32),
    )


def patch_embed_reference(x_nchw, params, patch_size):
    """Pure-JAX reference: same bf16 matmul operands, exact erf GELU, f32 output."""
    B, C, H, W = x_nchw.shape
    P = patch_size
    Hp, Wp = H // P, W // P
    D = params["w"].shape[1]
    xr = x_nchw.reshape(B, C, Hp, P, Wp, P)
    xr = jnp.transpose(xr, (0, 2, 4, 1, 3, 5)).reshape(B * Hp * Wp, C * P * P)
    y = jnp.dot(xr.astype(jnp.bfloat16), params["w"].astype(jnp.bfloat16),
                preferred_element_type=jnp.float32) + params["b"]
    mu = jnp.mean(y, axis=-1, keepdims=True)
    d = y - mu
    var = jnp.mean(d * d, axis=-1, keepdims=True)
    yn = d * jax.lax.rsqrt(var + LN_EPS) * params["g"] + params["beta"]
    out = 0.5 * yn * (1.0 + jax.lax.erf(yn * _INV_SQRT2))
    return jnp.transpose(out.reshape(B, Hp, Wp, D), (0, 3, 1, 2))


if __name__ == "__main__":
    key = jax.random.PRNGKey(0)
    kx, kp = jax.random.split(key)

    # Small demo shapes consistent with the module: patch_size=16 (default),
    # in_chans=3 (default), embed_dim=128 (multiple of 128 for lane density),
    # 64x64 input -> 4x4 patch grid, 32 tokens -> 2 grid steps of 16 tokens.
    B, C, H, W = 2, 3, 64, 64
    P, D = 16, 128

    params = make_params(kp, in_chans=C, embed_dim=D, patch_size=P)
    x = jax.random.normal(kx, (B, C, H, W), jnp.float32)

    out = patch_embed_forward(x, params, patch_size=P)
    jax.block_until_ready(out)
    assert out.shape == (B, D, H // P, W // P) and out.dtype == jnp.bfloat16

    ref = patch_embed_reference(x, params, patch_size=P)
    err = float(jnp.max(jnp.abs(out.astype(jnp.float32) - ref)))
    # Tolerance covers: bf16 output rounding (~1.5e-2 worst case at |x|~4),
    # tanh-GELU vs exact erf GELU (~3e-3), bf16 matmul operands (shared with ref).
    assert err < 3e-2, err

    print("KERNEL_OK")
</pallas_src>

<mosaic_0001>
module attributes {stable_mosaic.version = 11 : i64} {
  func.func @patch_embed_kernel(%arg0: i32, %arg1: memref<16x768xbf16, #tpu.memory_space<vmem>>, %arg2: memref<768x128xbf16, #tpu.memory_space<vmem>>, %arg3: memref<1x128xf32, #tpu.memory_space<vmem>>, %arg4: memref<1x128xf32, #tpu.memory_space<vmem>>, %arg5: memref<1x128xf32, #tpu.memory_space<vmem>>, %arg6: memref<16x128xbf16, #tpu.memory_space<vmem>>) attributes {dimension_semantics = [#tpu.dimension_semantics<parallel>], iteration_bounds = array<i64: 2>, scalar_prefetch = 0 : i64, scratch_operands = 0 : i64, tpu.core_type = #tpu.core_type<tc>, window_params = [{transform_indices = @transform_0, window_bounds = array<i64: 16, 768>}, {pipeline_mode = #tpu.pipeline_mode<synchronous>, transform_indices = @transform_1, window_bounds = array<i64: 768, 128>}, {pipeline_mode = #tpu.pipeline_mode<synchronous>, transform_indices = @transform_2, window_bounds = array<i64: 1, 128>}, {pipeline_mode = #tpu.pipeline_mode<synchronous>, transform_indices = @transform_3, window_bounds = array<i64: 1, 128>}, {pipeline_mode = #tpu.pipeline_mode<synchronous>, transform_indices = @transform_4, window_bounds = array<i64: 1, 128>}, {transform_indices = @transform_5, window_bounds = array<i64: 16, 128>}]} {
    %c0 = arith.constant 0 : index
    %c0_0 = arith.constant 0 : index
    %0 = vector.load %arg1[%c0, %c0_0] : memref<16x768xbf16, #tpu.memory_space<vmem>>, vector<16x768xbf16>
    %c0_1 = arith.constant 0 : index
    %c0_2 = arith.constant 0 : index
    %1 = vector.load %arg2[%c0_1, %c0_2] : memref<768x128xbf16, #tpu.memory_space<vmem>>, vector<768x128xbf16>
    %cst = arith.constant dense<0.000000e+00> : vector<16x128xf32>
    %2 = tpu.matmul %0, %1, %cst {dimension_numbers = #tpu.dot_dimension_numbers<[1], [0], [0], [1], [0, 0, 1, 1], [], []>} : vector<16x768xbf16>, vector<768x128xbf16>, vector<16x128xf32> -> vector<16x128xf32>
    %c0_3 = arith.constant 0 : index
    %c0_4 = arith.constant 0 : index
    %3 = vector.load %arg3[%c0_3, %c0_4] : memref<1x128xf32, #tpu.memory_space<vmem>>, vector<1x128xf32>
    %4 = vector.broadcast %3 : vector<1x128xf32> to vector<16x128xf32>
    %5 = arith.addf %2, %4 : vector<16x128xf32>
    %cst_5 = arith.constant dense<0.000000e+00> : vector<16xf32>
    %6 = vector.multi_reduction <add>, %5, %cst_5 [1] : vector<16x128xf32> to vector<16xf32>
    %7 = vector.shape_cast %6 : vector<16xf32> to vector<16x1xf32>
    %cst_6 = arith.constant 1.280000e+02 : f32
    %8 = vector.broadcast %cst_6 : f32 to vector<16x1xf32>
    %9 = arith.divf %7, %8 : vector<16x1xf32>
    %10 = arith.mulf %5, %5 : vector<16x128xf32>
    %cst_7 = arith.constant dense<0.000000e+00> : vector<16xf32>
    %11 = vector.multi_reduction <add>, %10, %cst_7 [1] : vector<16x128xf32> to vector<16xf32>
    %12 = vector.shape_cast %11 : vector<16xf32> to vector<16x1xf32>
    %cst_8 = arith.constant 1.280000e+02 : f32
    %13 = vector.broadcast %cst_8 : f32 to vector<16x1xf32>
    %14 = arith.divf %12, %13 : vector<16x1xf32>
    %15 = arith.mulf %9, %9 : vector<16x1xf32>
    %16 = arith.subf %14, %15 : vector<16x1xf32>
    %cst_9 = arith.constant 0.000000e+00 : f32
    %17 = vector.broadcast %cst_9 : f32 to vector<16x1xf32>
    %18 = arith.maximumf %16, %17 : vector<16x1xf32>
    %19 = vector.broadcast %9 : vector<16x1xf32> to vector<16x128xf32>
    %20 = arith.subf %5, %19 : vector<16x128xf32>
    %cst_10 = arith.constant 9.99999974E-6 : f32
    %21 = vector.broadcast %cst_10 : f32 to vector<16x1xf32>
    %22 = arith.addf %18, %21 : vector<16x1xf32>
    %23 = math.rsqrt %22 : vector<16x1xf32>
    %24 = vector.broadcast %23 : vector<16x1xf32> to vector<16x128xf32>
    %25 = arith.mulf %20, %24 : vector<16x128xf32>
    %c0_11 = arith.constant 0 : index
    %c0_12 = arith.constant 0 : index
    %26 = vector.load %arg4[%c0_11, %c0_12] : memref<1x128xf32, #tpu.memory_space<vmem>>, vector<1x128xf32>
    %27 = vector.broadcast %26 : vector<1x128xf32> to vector<16x128xf32>
    %28 = arith.mulf %25, %27 : vector<16x128xf32>
    %c0_13 = arith.constant 0 : index
    %c0_14 = arith.constant 0 : index
    %29 = vector.load %arg5[%c0_13, %c0_14] : memref<1x128xf32, #tpu.memory_space<vmem>>, vector<1x128xf32>
    %30 = vector.broadcast %29 : vector<1x128xf32> to vector<16x128xf32>
    %31 = arith.addf %28, %30 : vector<16x128xf32>
    %cst_15 = arith.constant 5.000000e-01 : f32
    %32 = vector.broadcast %cst_15 : f32 to vector<16x128xf32>
    %33 = arith.mulf %32, %31 : vector<16x128xf32>
    %cst_16 = arith.constant 4.471500e-02 : f32
    %34 = vector.broadcast %cst_16 : f32 to vector<16x128xf32>
    %35 = arith.mulf %34, %31 : vector<16x128xf32>
    %36 = arith.mulf %35, %31 : vector<16x128xf32>
    %37 = arith.mulf %36, %31 : vector<16x128xf32>
    %38 = arith.addf %31, %37 : vector<16x128xf32>
    %cst_17 = arith.constant 0.797884583 : f32
    %39 = vector.broadcast %cst_17 : f32 to vector<16x128xf32>
    %40 = arith.mulf %39, %38 : vector<16x128xf32>
    %41 = math.tanh %40 : vector<16x128xf32>
    %cst_18 = arith.constant 1.000000e+00 : f32
    %42 = vector.broadcast %cst_18 : f32 to vector<16x128xf32>
    %43 = arith.addf %42, %41 : vector<16x128xf32>
    %44 = arith.mulf %33, %43 : vector<16x128xf32>
    %45 = arith.truncf %44 : vector<16x128xf32> to vector<16x128xbf16>
    %c0_19 = arith.constant 0 : index
    %c0_20 = arith.constant 0 : index
    %46 = vector.load %arg6[%c0_19, %c0_20] : memref<16x128xbf16, #tpu.memory_space<vmem>>, vector<16x128xbf16>
    tpu.vector_store %arg6[%c0_19, %c0_20], %45 {strides = array<i32>} : memref<16x128xbf16, #tpu.memory_space<vmem>>, vector<16x128xbf16>,
    return
  }
  func.func @transform_0(%arg0: i32) -> (i32, i32) {
    %c0_i32 = arith.constant 0 : i32
    %c0_i32_0 = arith.constant 0 : i32
    return %arg0, %c0_i32 : i32, i32
  }
  func.func @transform_1(%arg0: i32) -> (i32, i32) {
    %c0_i32 = arith.constant 0 : i32
    %c0_i32_0 = arith.constant 0 : i32
    %c0_i32_1 = arith.constant 0 : i32
    return %c0_i32, %c0_i32_0 : i32, i32
  }
  func.func @transform_2(%arg0: i32) -> (i32, i32) {
    %c0_i32 = arith.constant 0 : i32
    %c0_i32_0 = arith.constant 0 : i32
    %c0_i32_1 = arith.constant 0 : i32
    return %c0_i32, %c0_i32_0 : i32, i32
  }
  func.func @transform_3(%arg0: i32) -> (i32, i32) {
    %c0_i32 = arith.constant 0 : i32
    %c0_i32_0 = arith.constant 0 : i32
    %c0_i32_1 = arith.constant 0 : i32
    return %c0_i32, %c0_i32_0 : i32, i32
  }
  func.func @transform_4(%arg0: i32) -> (i32, i32) {
    %c0_i32 = arith.constant 0 : i32
    %c0_i32_0 = arith.constant 0 : i32
    %c0_i32_1 = arith.constant 0 : i32
    return %c0_i32, %c0_i32_0 : i32, i32
  }
  func.func @transform_5(%arg0: i32) -> (i32, i32) {
    %c0_i32 = arith.constant 0 : i32
    %c0_i32_0 = arith.constant 0 : i32
    return %arg0, %c0_i32 : i32, i32
  }
}

</mosaic_0001>

<llo_original>
// kernel: tpu_custom_call.1
$region0: #{tpu_custom_call.1}
  #allocation0 [shape = 'u32[]', space=smem, size = 0x4, offset = 0x4, fixed_abs, tag = 'smem constant byte address 0x4 - core index']
  #allocation1 [shape = 'u32[144,128]{1,0:T(1,128)}', space=vmem, size = 0x12000, scoped, tag = 'internal scratch']
  %s0 = inlined_call_operand.hbm [shape: bf16[32,768], index: 0, kind: input, shape index: {}]
  %s1 = inlined_call_operand.hbm [shape: bf16[768,128], index: 1, kind: input, shape index: {}]
  %s2 = inlined_call_operand.vmem [shape: f32[1,128], index: 2, kind: input, shape index: {}]
  %s3 = inlined_call_operand.vmem [shape: f32[1,128], index: 3, kind: input, shape index: {}]
  %s4 = inlined_call_operand.vmem [shape: f32[1,128], index: 4, kind: input, shape index: {}]
  %s5 = inlined_call_operand.hbm [shape: bf16[32,128], index: 5, kind: output, shape index: {}]
  %s6 = sld [smem:[#allocation0]]
  $region61: #{tpu_custom_call.1} parent=0
    _
  %s8 = ssub.s32 1, %s6
  %s9 = scalar_select 0, %s8, %s6
  $region1: #{tpu_custom_call.1} parent=0
    #allocation2 [shape = 'u8[49152]{0}', space=vmem, size = 0xc000, scoped, tag = 'input window, operand 0']
    #allocation3 [shape = 's32[2]{0}', space=sflag, size = 0x8, scoped, tag = 'scoped memory for tpu_custom_call.1']
    #allocation4 [shape = 's32[2]{0}', space=sflag, size = 0x8, scoped, tag = 'scoped memory for tpu_custom_call.1']
    #allocation5 [shape = 'u8[196608]{0}', space=vmem, size = 0x30000, scoped, tag = 'input window, operand 1, single buffered']
    #allocation6 [shape = 's32[1]{0}', space=sflag, size = 0x4, scoped, tag = 'scoped memory for tpu_custom_call.1']
    #allocation7 [shape = 'u8[8192]{0}', space=vmem, size = 0x2000, scoped, tag = 'output window, operand 0']
    %10 = vsyncpa [#allocation3], 0
    %s11 = scalar_lea.sflag [#allocation3], 1
    %12 = vsyncpa %s11, 0
    %13 = vsyncpa [#allocation6], 0
    %14 = vsyncpa [#allocation4], 0
    %s15 = scalar_lea.sflag [#allocation4], 1
    %16 = vsyncpa %s15, 0
    loop: start=0, step=1, limit=4
    $region2: #{tpu_custom_call.1} parent=1 // loop_pre_header
      _
    $region3: #{tpu_custom_call.1} parent=1 // loop_header
      %s18 = sphi 0, %s22
      %p19 = scmp.ge.s32.totalorder %s18, 4
      %s28 = sphi 0, %s30
      %s31 = sphi 0, %s28
      %s32 = sphi 0, %s31
      %s48 = sphi 0, %s32
      %s52 = sphi 0, %s52
      %s54 = sphi 0, %s52
      %s55 = sphi 0, %s54
      %s69 = sphi 0, %s55
      %s73 = sphi 0, %s73
      %s75 = sphi 0, %s73
      %s76 = sphi 0, %s75
      %s90 = sphi 0, %s76
      %s94 = sphi 0, %s94
      %s96 = sphi 0, %s94
      %s97 = sphi 0, %s96
      %s111 = sphi 0, %s97
      %s115 = sphi 0, %s115
      %s117 = sphi 0, %s115
      %s118 = sphi 0, %s117
      %s132 = sphi 0, %s118
      %s138 = sphi 0, %s140
      %s141 = sphi 0, %s138
      %s142 = sphi 0, %s141
      %s158 = sphi 0, %s142
    $region4: #{tpu_custom_call.1} parent=1 // loop_header_branch
      %21 = sbr.rel (%p19) target = $region8
    $region5: #{tpu_custom_call.1} parent=1 // loop_body
      %s23 = ssub.s32 %s18, 1
      %s24 = ssub.s32 %s18, 2
      %s25 = sadd.s32 %s18, 1
      %s26 = ssub.s32 %s18, %s25
      %p27 = scmp.eq.s32.totalorder %s26, 0
      %s29 = sadd.s32 %s28, 1
      %s30 = scalar_select %p27, %s28, %s29
      %p33 = pneg %p27
      %p34 = scmp.eq.s32.totalorder %s18, 1
      %p35 = por %p33, %p34
      %p36 = scmp.ne.s32.totalorder %s28, %s31
      %p37 = scmp.eq.s32.totalorder %s18, 0
      %p38 = por %p36, %p37
      %p39 = scmp.ne.s32.totalorder %s28, %s31
      %p40 = scmp.eq.s32.totalorder %s23, 1
      %p41 = por %p39, %p40
      %p42 = scmp.ne.s32.totalorder %s31, %s32
      %p43 = scmp.eq.s32.totalorder %s23, 0
      %p44 = por %p42, %p43
      %p45 = scmp.ne.s32.totalorder %s31, %s32
      %p46 = scmp.eq.s32.totalorder %s24, 1
      %p47 = por %p45, %p46
      %p49 = scmp.ne.s32.totalorder %s32, %s48
      %p50 = scmp.eq.s32.totalorder %s24, 0
      %p51 = por %p49, %p50
      %s53 = sadd.s32 %s52, 1
      %p56 = scmp.eq.s32.totalorder %s18, 1
      %p57 = scmp.ne.s32.totalorder %s52, %s54
      %p58 = scmp.eq.s32.totalorder %s18, 0
      %p59 = por %p57, %p58
      %p60 = scmp.ne.s32.totalorder %s52, %s54
      %p61 = scmp.eq.s32.totalorder %s23, 1
      %p62 = por %p60, %p61
      %p63 = scmp.ne.s32.totalorder %s54, %s55
      %p64 = scmp.eq.s32.totalorder %s23, 0
      %p65 = por %p63, %p64
      %p66 = scmp.ne.s32.totalorder %s54, %s55
      %p67 = scmp.eq.s32.totalorder %s24, 1
      %p68 = por %p66, %p67
      %p70 = scmp.ne.s32.totalorder %s55, %s69
      %p71 = scmp.eq.s32.totalorder %s24, 0
      %p72 = por %p70, %p71
      %s74 = sadd.s32 %s73, 1
      %p77 = scmp.eq.s32.totalorder %s18, 1
      %p78 = scmp.ne.s32.totalorder %s73, %s75
      %p79 = scmp.eq.s32.totalorder %s18, 0
      %p80 = por %p78, %p79
      %p81 = scmp.ne.s32.totalorder %s73, %s75
      %p82 = scmp.eq.s32.totalorder %s23, 1
      %p83 = por %p81, %p82
      %p84 = scmp.ne.s32.totalorder %s75, %s76
      %p85 = scmp.eq.s32.totalorder %s23, 0
      %p86 = por %p84, %p85
      %p87 = scmp.ne.s32.totalorder %s75, %s76
      %p88 = scmp.eq.s32.totalorder %s24, 1
      %p89 = por %p87, %p88
      %p91 = scmp.ne.s32.totalorder %s76, %s90
      %p92 = scmp.eq.s32.totalorder %s24, 0
      %p93 = por %p91, %p92
      %s95 = sadd.s32 %s94, 1
      %p98 = scmp.eq.s32.totalorder %s18, 1
      %p99 = scmp.ne.s32.totalorder %s94, %s96
      %p100 = scmp.eq.s32.totalorder %s18, 0
      %p101 = por %p99, %p100
      %p102 = scmp.ne.s32.totalorder %s94, %s96
      %p103 = scmp.eq.s32.totalorder %s23, 1
      %p104 = por %p102, %p103
      %p105 = scmp.ne.s32.totalorder %s96, %s97
      %p106 = scmp.eq.s32.totalorder %s23, 0
      %p107 = por %p105, %p106
      %p108 = scmp.ne.s32.totalorder %s96, %s97
      %p109 = scmp.eq.s32.totalorder %s24, 1
      %p110 = por %p108, %p109
      %p112 = scmp.ne.s32.totalorder %s97, %s111
      %p113 = scmp.eq.s32.totalorder %s24, 0
      %p114 = por %p112, %p113
      %s116 = sadd.s32 %s115, 1
      %p119 = scmp.eq.s32.totalorder %s18, 1
      %p120 = scmp.ne.s32.totalorder %s115, %s117
      %p121 = scmp.eq.s32.totalorder %s18, 0
      %p122 = por %p120, %p121
      %p123 = scmp.ne.s32.totalorder %s115, %s117
      %p124 = scmp.eq.s32.totalorder %s23, 1
      %p125 = por %p123, %p124
      %p126 = scmp.ne.s32.totalorder %s117, %s118
      %p127 = scmp.eq.s32.totalorder %s23, 0
      %p128 = por %p126, %p127
      %p129 = scmp.ne.s32.totalorder %s117, %s118
      %p130 = scmp.eq.s32.totalorder %s24, 1
      %p131 = por %p129, %p130
      %p133 = scmp.ne.s32.totalorder %s118, %s132
      %p134 = scmp.eq.s32.totalorder %s24, 0
      %p135 = por %p133, %p134
      %s136 = ssub.s32 %s18, %s25
      %p137 = scmp.eq.s32.totalorder %s136, 0
      %s139 = sadd.s32 %s138, 1
      %s140 = scalar_select %p137, %s138, %s139
      %p143 = pneg %p137
      %p144 = scmp.eq.s32.totalorder %s18, 1
      %p145 = por %p143, %p144
      %p146 = scmp.ne.s32.totalorder %s138, %s141
      %p147 = scmp.eq.s32.totalorder %s18, 0
      %p148 = por %p146, %p147
      %p149 = scmp.ne.s32.totalorder %s138, %s141
      %p150 = scmp.eq.s32.totalorder %s23, 1
      %p151 = por %p149, %p150
      %p152 = scmp.ne.s32.totalorder %s141, %s142
      %p153 = scmp.eq.s32.totalorder %s23, 0
      %p154 = por %p152, %p153
      %p155 = scmp.ne.s32.totalorder %s141, %s142
      %p156 = scmp.eq.s32.totalorder %s24, 1
      %p157 = por %p155, %p156
      %p159 = scmp.ne.s32.totalorder %s142, %s158
      %p160 = scmp.eq.s32.totalorder %s24, 0
      %p161 = por %p159, %p160
      %p162 = scmp.le.s32.totalorder 1, %s18
      %p163 = scmp.lt.s32.totalorder %s18, 3
      %p164 = pnand %p162, %p163
      %p165 = pneg %p164
      // Predicated region
      $region9: #{tpu_custom_call.1} parent=5 // pred_check
        _
      $region10: #{tpu_custom_call.1} parent=5 // pred_check_branch
        %167 = sbr.rel (%p164) target = $region12
      $region11: #{tpu_custom_call.1} parent=5 // pred_region
        %s168 = ssub.s32 %s18, 1
        // Predicated region
        $region13: #{tpu_custom_call.1} parent=11 // pred_check
          %p169 = pneg %p65
        $region14: #{tpu_custom_call.1} parent=11 // pred_check_branch
          %171 = sbr.rel (%p169) target = $region16
        $region15: #{tpu_custom_call.1} parent=11 // pred_region
          %s173 = ssub.s32 6144, 6144
          %174 = vsyncadd [#allocation6], %s173
          %s175 = sshll.u32 [#allocation5], 4
          %s176 = int_to_ptr.vmem [resolvable:$true] %s175
          %181 = dma.hbm_to_vmem [thread:$0]  %s1, 6144, %s176, [#allocation6], 64, 64, 4
        $region16: #{tpu_custom_call.1} parent=11 // pred_fallthru
          _
        // Predicated region
        $region17: #{tpu_custom_call.1} parent=11 // pred_check
          %p182 = pneg %p86
        $region18: #{tpu_custom_call.1} parent=11 // pred_check_branch
          %184 = sbr.rel (%p182) target = $region20
        $region19: #{tpu_custom_call.1} parent=11 // pred_region
          _
        $region20: #{tpu_custom_call.1} parent=11 // pred_fallthru
          _
        // Predicated region
        $region21: #{tpu_custom_call.1} parent=11 // pred_check
          %p185 = pneg %p107
        $region22: #{tpu_custom_call.1} parent=11 // pred_check_branch
          %187 = sbr.rel (%p185) target = $region24
        $region23: #{tpu_custom_call.1} parent=11 // pred_region
          _
        $region24: #{tpu_custom_call.1} parent=11 // pred_fallthru
          _
        // Predicated region
        $region25: #{tpu_custom_call.1} parent=11 // pred_check
          %p188 = pneg %p128
        $region26: #{tpu_custom_call.1} parent=11 // pred_check_branch
          %190 = sbr.rel (%p188) target = $region28
        $region27: #{tpu_custom_call.1} parent=11 // pred_region
          _
        $region28: #{tpu_custom_call.1} parent=11 // pred_fallthru
          _
      $region12: #{tpu_custom_call.1} parent=5 // pred_fallthru
        _
      %p191 = scmp.lt.s32.totalorder %s18, 2
      // Predicated region
      $region29: #{tpu_custom_call.1} parent=5 // pred_check
        %p192 = pneg %p191
      $region30: #{tpu_custom_call.1} parent=5 // pred_check_branch
        %194 = sbr.rel (%p192) target = $region32
      $region31: #{tpu_custom_call.1} parent=5 // pred_region
        // Predicated region
        $region33: #{tpu_custom_call.1} parent=31 // pred_check
          %p195 = pneg %p38
        $region34: #{tpu_custom_call.1} parent=31 // pred_check_branch
          %197 = sbr.rel (%p195) target = $region36
        $region35: #{tpu_custom_call.1} parent=31 // pred_region
          %s198 = sand.u32 %s28, 1
          %s199 = scalar_lea.sflag [#allocation3], %s198
          %s200 = sand.u32 %s28, 1
          %s201 = smul.addr %s200, 48
          %s202 = scalar_lea.vmem [#allocation2], %s201
          %s203 = smul.u32 2, %s18
          %s205 = ssub.s32 768, 768
          %206 = vsyncadd %s199, %s205
          %s207 = smul.addr %s203, 6
          %s208 = smul.addr %s207, 64
          %s209 = scalar_lea.hbm %s0, %s208
          %s210 = sshll.u32 %s202, 4
          %s211 = int_to_ptr.vmem [resolvable:$true] %s210
          %216 = dma.hbm_to_vmem [thread:$0]  %s209, 768, %s211, %s199, 384, 384, 24
        $region36: #{tpu_custom_call.1} parent=31 // pred_fallthru
          _
      $region32: #{tpu_custom_call.1} parent=5 // pred_fallthru
        _
      %p217 = scmp.le.s32.totalorder 1, %s18
      %p218 = scmp.lt.s32.totalorder %s18, 3
      %p219 = pnand %p217, %p218
      %p220 = pneg %p219
      // Predicated region
      $region37: #{tpu_custom_call.1} parent=5 // pred_check
        _
      $region38: #{tpu_custom_call.1} parent=5 // pred_check_branch
        %222 = sbr.rel (%p219) target = $region40
      $region39: #{tpu_custom_call.1} parent=5 // pred_region
        %s223 = ssub.s32 %s18, 1
        %s224 = sand.u32 %s31, 1
        %s225 = scalar_lea.sflag [#allocation3], %s224
        %s226 = sand.u32 %s31, 1
        %s227 = smul.addr %s226, 48
        %s228 = scalar_lea.vmem [#allocation2], %s227
        // Predicated region
        $region41: #{tpu_custom_call.1} parent=39 // pred_check
          %p229 = pneg %p44
        $region42: #{tpu_custom_call.1} parent=39 // pred_check_branch
          %231 = sbr.rel (%p229) target = $region44
        $region43: #{tpu_custom_call.1} parent=39 // pred_region
          %232 = dma.done %s225, 768
        $region44: #{tpu_custom_call.1} parent=39 // pred_fallthru
          _
        // Predicated region
        $region45: #{tpu_custom_call.1} parent=39 // pred_check
          %p233 = pneg %p65
        $region46: #{tpu_custom_call.1} parent=39 // pred_check_branch
          %235 = sbr.rel (%p233) target = $region48
        $region47: #{tpu_custom_call.1} parent=39 // pred_region
          %236 = dma.done [#allocation6], 6144
        $region48: #{tpu_custom_call.1} parent=39 // pred_fallthru
          _
        %s237 = sand.u32 %s31, 1
        %s238 = scalar_lea.sflag [#allocation3], %s237
        %s239 = sand.u32 %s31, 1
        %s240 = smul.addr %s239, 48
        %s241 = scalar_lea.vmem [#allocation2], %s240
        %p242 = pneg %p44
        %p243 = pneg %p41
        %p244 = pneg %p65
        %p245 = pneg %p62
        %p246 = pneg %p86
        %p247 = pneg %p83
        %p248 = pneg %p107
        %p249 = pneg %p104
        %p250 = pneg %p128
        %p251 = pneg %p125
        %p252 = pneg %p154
        %p253 = pneg %p151
        %s254 = sand.u32 %s141, 1
        %s255 = scalar_lea.sflag [#allocation4], %s254
        %s256 = sand.u32 %s141, 1
        %s257 = smul.addr %s256, 8
        %s258 = scalar_lea.vmem [#allocation7], %s257
        %s259 = smul.u32 2, %s23
        %s260 = smul.u32 2, %s23
        %v262 = vld [vmem:[%s228] sm:$0xff]
        %v263 = vld [vmem:[%s228 + $0x8] sm:$0xff]
        %v264 = vld [vmem:[%s228 + $0x10] sm:$0xff]
        %v265 = vld [vmem:[%s228 + $0x18] sm:$0xff]
        %v266 = vld [vmem:[%s228 + $0x20] sm:$0xff]
        %v267 = vld [vmem:[%s228 + $0x28] sm:$0xff]
        %v268 = vld [vmem:[#allocation5] sm:$0xf]
        %v269 = vld [vmem:[#allocation5 + $0x4] sm:$0xf]
        %v270 = vld [vmem:[#allocation5 + $0x8] sm:$0xf]
        %v271 = vld [vmem:[#allocation5 + $0xc] sm:$0xf]
        %v272 = vld [vmem:[#allocation5 + $0x10] sm:$0xf]
        %v273 = vld [vmem:[#allocation5 + $0x14] sm:$0xf]
        %v274 = vld [vmem:[#allocation5 + $0x18] sm:$0xf]
        %v275 = vld [vmem:[#allocation5 + $0x1c] sm:$0xf]
        %v276 = vld [vmem:[#allocation5 + $0x20] sm:$0xf]
        %v277 = vld [vmem:[#allocation5 + $0x24] sm:$0xf]
        %v278 = vld [vmem:[#allocation5 + $0x28] sm:$0xf]
        %v279 = vld [vmem:[#allocation5 + $0x2c] sm:$0xf]
        %v280 = vld [vmem:[#allocation5 + $0x30] sm:$0xf]
        %v281 = vld [vmem:[#allocation5 + $0x34] sm:$0xf]
        %v282 = vld [vmem:[#allocation5 + $0x38] sm:$0xf]
        %v283 = vld [vmem:[#allocation5 + $0x3c] sm:$0xf]
        %v284 = vld [vmem:[#allocation5 + $0x40] sm:$0xf]
        %v285 = vld [vmem:[#allocation5 + $0x44] sm:$0xf]
        %v286 = vld [vmem:[#allocation5 + $0x48] sm:$0xf]
        %v287 = vld [vmem:[#allocation5 + $0x4c] sm:$0xf]
        %v288 = vld [vmem:[#allocation5 + $0x50] sm:$0xf]
        %v289 = vld [vmem:[#allocation5 + $0x54] sm:$0xf]
        %v290 = vld [vmem:[#allocation5 + $0x58] sm:$0xf]
        %v291 = vld [vmem:[#allocation5 + $0x5c] sm:$0xf]
        %v292 = vld [vmem:[#allocation5 + $0x60] sm:$0xf]
        %v293 = vld [vmem:[#allocation5 + $0x64] sm:$0xf]
        %v294 = vld [vmem:[#allocation5 + $0x68] sm:$0xf]
        %v295 = vld [vmem:[#allocation5 + $0x6c] sm:$0xf]
        %v296 = vld [vmem:[#allocation5 + $0x70] sm:$0xf]
        %v297 = vld [vmem:[#allocation5 + $0x74] sm:$0xf]
        %v298 = vld [vmem:[#allocation5 + $0x78] sm:$0xf]
        %v299 = vld [vmem:[#allocation5 + $0x7c] sm:$0xf]
        %v300 = vld [vmem:[#allocation5 + $0x80] sm:$0xf]
        %v301 = vld [vmem:[#allocation5 + $0x84] sm:$0xf]
        %v302 = vld [vmem:[#allocation5 + $0x88] sm:$0xf]
        %v303 = vld [vmem:[#allocation5 + $0x8c] sm:$0xf]
        %v304 = vld [vmem:[#allocation5 + $0x90] sm:$0xf]
        %v305 = vld [vmem:[#allocation5 + $0x94] sm:$0xf]
        %v306 = vld [vmem:[#allocation5 + $0x98] sm:$0xf]
        %v307 = vld [vmem:[#allocation5 + $0x9c] sm:$0xf]
        %v308 = vld [vmem:[#allocation5 + $0xa0] sm:$0xf]
        %v309 = vld [vmem:[#allocation5 + $0xa4] sm:$0xf]
        %v310 = vld [vmem:[#allocation5 + $0xa8] sm:$0xf]
        %v311 = vld [vmem:[#allocation5 + $0xac] sm:$0xf]
        %v312 = vld [vmem:[#allocation5 + $0xb0] sm:$0xf]
        %v313 = vld [vmem:[#allocation5 + $0xb4] sm:$0xf]
        %v314 = vld [vmem:[#allocation5 + $0xb8] sm:$0xf]
        %v315 = vld [vmem:[#allocation5 + $0xbc] sm:$0xf]
        %v316 = vld [vmem:[#allocation5 + $0xc0] sm:$0xf]
        %v317 = vld [vmem:[#allocation5 + $0xc4] sm:$0xf]
        %v318 = vld [vmem:[#allocation5 + $0xc8] sm:$0xf]
        %v319 = vld [vmem:[#allocation5 + $0xcc] sm:$0xf]
        %v320 = vld [vmem:[#allocation5 + $0xd0] sm:$0xf]
        %v321 = vld [vmem:[#allocation5 + $0xd4] sm:$0xf]
        %v322 = vld [vmem:[#allocation5 + $0xd8] sm:$0xf]
        %v323 = vld [vmem:[#allocation5 + $0xdc] sm:$0xf]
        %v324 = vld [vmem:[#allocation5 + $0xe0] sm:$0xf]
        %v325 = vld [vmem:[#allocation5 + $0xe4] sm:$0xf]
        %v326 = vld [vmem:[#allocation5 + $0xe8] sm:$0xf]
        %v327 = vld [vmem:[#allocation5 + $0xec] sm:$0xf]
        %v328 = vld [vmem:[#allocation5 + $0xf0] sm:$0xf]
        %v329 = vld [vmem:[#allocation5 + $0xf4] sm:$0xf]
        %v330 = vld [vmem:[#allocation5 + $0xf8] sm:$0xf]
        %v331 = vld [vmem:[#allocation5 + $0xfc] sm:$0xf]
        %v332 = vld [vmem:[#allocation5 + $0x100] sm:$0xf]
        %v333 = vld [vmem:[#allocation5 + $0x104] sm:$0xf]
        %v334 = vld [vmem:[#allocation5 + $0x108] sm:$0xf]
        %v335 = vld [vmem:[#allocation5 + $0x10c] sm:$0xf]
        %v336 = vld [vmem:[#allocation5 + $0x110] sm:$0xf]
        %v337 = vld [vmem:[#allocation5 + $0x114] sm:$0xf]
        %v338 = vld [vmem:[#allocation5 + $0x118] sm:$0xf]
        %v339 = vld [vmem:[#allocation5 + $0x11c] sm:$0xf]
        %v340 = vld [vmem:[#allocation5 + $0x120] sm:$0xf]
        %v341 = vld [vmem:[#allocation5 + $0x124] sm:$0xf]
        %v342 = vld [vmem:[#allocation5 + $0x128] sm:$0xf]
        %v343 = vld [vmem:[#allocation5 + $0x12c] sm:$0xf]
        %v344 = vld [vmem:[#allocation5 + $0x130] sm:$0xf]
        %v345 = vld [vmem:[#allocation5 + $0x134] sm:$0xf]
        %v346 = vld [vmem:[#allocation5 + $0x138] sm:$0xf]
        %v347 = vld [vmem:[#allocation5 + $0x13c] sm:$0xf]
        %v348 = vld [vmem:[#allocation5 + $0x140] sm:$0xf]
        %v349 = vld [vmem:[#allocation5 + $0x144] sm:$0xf]
        %v350 = vld [vmem:[#allocation5 + $0x148] sm:$0xf]
        %v351 = vld [vmem:[#allocation5 + $0x14c] sm:$0xf]
        %v352 = vld [vmem:[#allocation5 + $0x150] sm:$0xf]
        %v353 = vld [vmem:[#allocation5 + $0x154] sm:$0xf]
        %v354 = vld [vmem:[#allocation5 + $0x158] sm:$0xf]
        %v355 = vld [vmem:[#allocation5 + $0x15c] sm:$0xf]
        %v356 = vld [vmem:[#allocation5 + $0x160] sm:$0xf]
        %v357 = vld [vmem:[#allocation5 + $0x164] sm:$0xf]
        %v358 = vld [vmem:[#allocation5 + $0x168] sm:$0xf]
        %v359 = vld [vmem:[#allocation5 + $0x16c] sm:$0xf]
        %v360 = vld [vmem:[#allocation5 + $0x170] sm:$0xf]
        %v361 = vld [vmem:[#allocation5 + $0x174] sm:$0xf]
        %v362 = vld [vmem:[#allocation5 + $0x178] sm:$0xf]
        %v363 = vld [vmem:[#allocation5 + $0x17c] sm:$0xf]
        %v364 = vld [vmem:[%s2] sm:$0x1]
        %v366 = vlaneseq
        %v367 = vshrl.u32 %v366, 7
        %v368 = vsub.s32 0, %v367
        %v369 = vrot.slane %v364, %v368
        %v377 = vunpack.c.l.b16 %v262
        %v378 = vunpack.c.h.b16 %v262
        %v379 = vunpack.c.l.b16 %v263
        %v380 = vunpack.c.h.b16 %v263
        %v381 = vunpack.c.l.b16 %v264
        %v382 = vunpack.c.h.b16 %v264
        %v383 = vunpack.c.l.b16 %v265
        %v384 = vunpack.c.h.b16 %v265
        %v385 = vunpack.c.l.b16 %v266
        %v386 = vunpack.c.h.b16 %v266
        %v387 = vunpack.c.l.b16 %v267
        %v388 = vunpack.c.h.b16 %v267
        %v389 = vpack.c.b16 %v383, %v377
        %v390 = vpack.c.b16 %v384, %v378
        %v391 = vpack.c.b16 %v385, %v379
        %v392 = vpack.c.b16 %v386, %v380
        %v393 = vpack.c.b16 %v387, %v381
        %v394 = vpack.c.b16 %v388, %v382
        %v497 = vunpack.c.l.b16 %v268
        %v498 = vunpack.c.l.b16 %v269
        %v499 = vunpack.c.l.b16 %v270
        %v500 = vunpack.c.l.b16 %v271
        %v501 = vunpack.c.l.b16 %v272
        %v502 = vunpack.c.l.b16 %v273
        %v503 = vunpack.c.l.b16 %v274
        %v504 = vunpack.c.l.b16 %v275
        %v505 = vunpack.c.l.b16 %v276
        %v506 = vunpack.c.l.b16 %v277
        %v507 = vunpack.c.l.b16 %v278
        %v508 = vunpack.c.l.b16 %v279
        %v509 = vunpack.c.l.b16 %v280
        %v510 = vunpack.c.l.b16 %v281
        %v511 = vunpack.c.l.b16 %v282
        %v512 = vunpack.c.l.b16 %v283
        %v513 = vunpack.c.l.b16 %v284
        %v514 = vunpack.c.l.b16 %v285
        %v515 = vunpack.c.l.b16 %v286
        %v516 = vunpack.c.l.b16 %v287
        %v517 = vunpack.c.l.b16 %v288
        %v518 = vunpack.c.l.b16 %v289
        %v519 = vunpack.c.l.b16 %v290
        %v520 = vunpack.c.l.b16 %v291
        %v521 = vunpack.c.l.b16 %v292
        %v522 = vunpack.c.l.b16 %v293
        %v523 = vunpack.c.l.b16 %v294
        %v524 = vunpack.c.l.b16 %v295
        %v525 = vunpack.c.l.b16 %v296
        %v526 = vunpack.c.l.b16 %v297
        %v527 = vunpack.c.l.b16 %v298
        %v528 = vunpack.c.l.b16 %v299
        %v529 = vunpack.c.l.b16 %v300
        %v530 = vunpack.c.l.b16 %v301
        %v531 = vunpack.c.l.b16 %v302
        %v532 = vunpack.c.l.b16 %v303
        %v533 = vunpack.c.l.b16 %v304
        %v534 = vunpack.c.l.b16 %v305
        %v535 = vunpack.c.l.b16 %v306
        %v536 = vunpack.c.l.b16 %v307
        %v537 = vunpack.c.l.b16 %v308
        %v538 = vunpack.c.l.b16 %v309
        %v539 = vunpack.c.l.b16 %v310
        %v540 = vunpack.c.l.b16 %v311
        %v541 = vunpack.c.l.b16 %v312
        %v542 = vunpack.c.l.b16 %v313
        %v543 = vunpack.c.l.b16 %v314
        %v544 = vunpack.c.l.b16 %v315
        %v545 = vunpack.c.l.b16 %v316
        %v546 = vunpack.c.l.b16 %v317
        %v547 = vunpack.c.l.b16 %v318
        %v548 = vunpack.c.l.b16 %v319
        %v549 = vunpack.c.l.b16 %v320
        %v550 = vunpack.c.l.b16 %v321
        %v551 = vunpack.c.l.b16 %v322
        %v552 = vunpack.c.l.b16 %v323
        %v553 = vunpack.c.l.b16 %v324
        %v554 = vunpack.c.l.b16 %v325
        %v555 = vunpack.c.l.b16 %v326
        %v556 = vunpack.c.l.b16 %v327
        %v557 = vunpack.c.l.b16 %v328
        %v558 = vunpack.c.l.b16 %v329
        %v559 = vunpack.c.l.b16 %v330
        %v560 = vunpack.c.l.b16 %v331
        %v561 = vunpack.c.l.b16 %v332
        %v562 = vunpack.c.l.b16 %v333
        %v563 = vunpack.c.l.b16 %v334
        %v564 = vunpack.c.l.b16 %v335
        %v565 = vunpack.c.l.b16 %v336
        %v566 = vunpack.c.l.b16 %v337
        %v567 = vunpack.c.l.b16 %v338
        %v568 = vunpack.c.l.b16 %v339
        %v569 = vunpack.c.l.b16 %v340
        %v570 = vunpack.c.l.b16 %v341
        %v571 = vunpack.c.l.b16 %v342
        %v572 = vunpack.c.l.b16 %v343
        %v573 = vunpack.c.l.b16 %v344
        %v574 = vunpack.c.l.b16 %v345
        %v575 = vunpack.c.l.b16 %v346
        %v576 = vunpack.c.l.b16 %v347
        %v577 = vunpack.c.l.b16 %v348
        %v578 = vunpack.c.l.b16 %v349
        %v579 = vunpack.c.l.b16 %v350
        %v580 = vunpack.c.l.b16 %v351
        %v581 = vunpack.c.l.b16 %v352
        %v582 = vunpack.c.l.b16 %v353
        %v583 = vunpack.c.l.b16 %v354
        %v584 = vunpack.c.l.b16 %v355
        %v585 = vunpack.c.l.b16 %v356
        %v586 = vunpack.c.l.b16 %v357
        %v587 = vunpack.c.l.b16 %v358
        %v588 = vunpack.c.l.b16 %v359
        %v589 = vunpack.c.l.b16 %v360
        %v590 = vunpack.c.l.b16 %v361
        %v591 = vunpack.c.l.b16 %v362
        %v592 = vunpack.c.l.b16 %v363
        %v593 = vpack.c.b16 %v498, %v497
        %v594 = vpack.c.b16 %v500, %v499
        %v595 = vpack.c.b16 %v502, %v501
        %v596 = vpack.c.b16 %v504, %v503
        %v597 = vpack.c.b16 %v506, %v505
        %v598 = vpack.c.b16 %v508, %v507
        %v599 = vpack.c.b16 %v510, %v509
        %v600 = vpack.c.b16 %v512, %v511
        %v601 = vpack.c.b16 %v514, %v513
        %v602 = vpack.c.b16 %v516, %v515
        %v603 = vpack.c.b16 %v518, %v517
        %v604 = vpack.c.b16 %v520, %v519
        %v605 = vpack.c.b16 %v522, %v521
        %v606 = vpack.c.b16 %v524, %v523
        %v607 = vpack.c.b16 %v526, %v525
        %v608 = vpack.c.b16 %v528, %v527
        %v609 = vpack.c.b16 %v530, %v529
        %v610 = vpack.c.b16 %v532, %v531
        %v611 = vpack.c.b16 %v534, %v533
        %v612 = vpack.c.b16 %v536, %v535
        %v613 = vpack.c.b16 %v538, %v537
        %v614 = vpack.c.b16 %v540, %v539
        %v615 = vpack.c.b16 %v542, %v541
        %v616 = vpack.c.b16 %v544, %v543
        %v617 = vpack.c.b16 %v546, %v545
        %v618 = vpack.c.b16 %v548, %v547
        %v619 = vpack.c.b16 %v550, %v549
        %v620 = vpack.c.b16 %v552, %v551
        %v621 = vpack.c.b16 %v554, %v553
        %v622 = vpack.c.b16 %v556, %v555
        %v623 = vpack.c.b16 %v558, %v557
        %v624 = vpack.c.b16 %v560, %v559
        %v625 = vpack.c.b16 %v562, %v561
        %v626 = vpack.c.b16 %v564, %v563
        %v627 = vpack.c.b16 %v566, %v565
        %v628 = vpack.c.b16 %v568, %v567
        %v629 = vpack.c.b16 %v570, %v569
        %v630 = vpack.c.b16 %v572, %v571
        %v631 = vpack.c.b16 %v574, %v573
        %v632 = vpack.c.b16 %v576, %v575
        %v633 = vpack.c.b16 %v578, %v577
        %v634 = vpack.c.b16 %v580, %v579
        %v635 = vpack.c.b16 %v582, %v581
        %v636 = vpack.c.b16 %v584, %v583
        %v637 = vpack.c.b16 %v586, %v585
        %v638 = vpack.c.b16 %v588, %v587
        %v639 = vpack.c.b16 %v590, %v589
        %v640 = vpack.c.b16 %v592, %v591
        %689 = vmatprep.subr.bf16.mxu0 0
        %690 = vmatpush1.bf16.msra.mxu0 %v593
        %691 = vmatprep.subr.bf16.mxu0 0
        %692 = vmatpush1.bf16.msra.mxu0 %v594
        %693 = vmatprep.subr.bf16.mxu0 0
        %694 = vmatpush1.bf16.msra.mxu0 %v595
        %695 = vmatprep.subr.bf16.mxu0 0
        %696 = vmatpush1.bf16.msra.mxu0 %v596
        %697 = vmatprep.subr.bf16.mxu0 0
        %698 = vmatpush1.bf16.msra.mxu0 %v597
        %699 = vmatprep.subr.bf16.mxu0 0
        %700 = vmatpush1.bf16.msra.mxu0 %v598
        %701 = vmatprep.subr.bf16.mxu0 0
        %702 = vmatpush1.bf16.msra.mxu0 %v599
        %703 = vmatprep.subr.bf16.mxu0 0
        %704 = vmatpush1.bf16.msra.mxu0 %v600
        %705 = vmatprep.subr.bf16.mxu0 0
        %706 = vmatpush1.bf16.msra.mxu0 %v601
        %707 = vmatprep.subr.bf16.mxu0 0
        %708 = vmatpush1.bf16.msra.mxu0 %v602
        %709 = vmatprep.subr.bf16.mxu0 0
        %710 = vmatpush1.bf16.msra.mxu0 %v603
        %711 = vmatprep.subr.bf16.mxu0 0
        %712 = vmatpush1.bf16.msra.mxu0 %v604
        %713 = vmatprep.subr.bf16.mxu0 0
        %714 = vmatpush1.bf16.msra.mxu0 %v605
        %715 = vmatprep.subr.bf16.mxu0 0
        %716 = vmatpush1.bf16.msra.mxu0 %v606
        %717 = vmatprep.subr.bf16.mxu0 0
        %718 = vmatpush1.bf16.msra.mxu0 %v607
        %719 = vmatprep.subr.bf16.mxu0 0
        %720 = vmatpush1.bf16.msra.mxu0 %v608
        %721 = vmatprep.mubr.bf16.mxu0 %v390
        %722 = vmatmul.mubr.bf16.gmra.mrb[0].mxu0 %v389
        %v723 = vpop.f32.mrb[0].mxu0
        %v724 = vadd.f32 %v369, %v723
        %v725 = vpop.f32.mrb[0].mxu0
        %v726 = vpop.f32.mrb[0].mxu0
        %v727 = vadd.f32 %v369, %v726
        %v728 = vpop.f32.mrb[0].mxu0
        %729 = vdwg.mxu0
        %730 = vmatprep.subr.bf16.mxu0 0
        %731 = vmatpush1.bf16.msra.mxu0 %v609
        %732 = vmatprep.subr.bf16.mxu0 0
        %733 = vmatpush1.bf16.msra.mxu0 %v610
        %734 = vmatprep.subr.bf16.mxu0 0
        %735 = vmatpush1.bf16.msra.mxu0 %v611
        %736 = vmatprep.subr.bf16.mxu0 0
        %737 = vmatpush1.bf16.msra.mxu0 %v612
        %738 = vmatprep.subr.bf16.mxu0 0
        %739 = vmatpush1.bf16.msra.mxu0 %v613
        %740 = vmatprep.subr.bf16.mxu0 0
        %741 = vmatpush1.bf16.msra.mxu0 %v614
        %742 = vmatprep.subr.bf16.mxu0 0
        %743 = vmatpush1.bf16.msra.mxu0 %v615
        %744 = vmatprep.subr.bf16.mxu0 0
        %745 = vmatpush1.bf16.msra.mxu0 %v616
        %746 = vmatprep.subr.bf16.mxu0 0
        %747 = vmatpush1.bf16.msra.mxu0 %v617
        %748 = vmatprep.subr.bf16.mxu0 0
        %749 = vmatpush1.bf16.msra.mxu0 %v618
        %750 = vmatprep.subr.bf16.mxu0 0
        %751 = vmatpush1.bf16.msra.mxu0 %v619
        %752 = vmatprep.subr.bf16.mxu0 0
        %753 = vmatpush1.bf16.msra.mxu0 %v620
        %754 = vmatprep.subr.bf16.mxu0 0
        %755 = vmatpush1.bf16.msra.mxu0 %v621
        %756 = vmatprep.subr.bf16.mxu0 0
        %757 = vmatpush1.bf16.msra.mxu0 %v622
        %758 = vmatprep.subr.bf16.mxu0 0
        %759 = vmatpush1.bf16.msra.mxu0 %v623
        %760 = vmatprep.subr.bf16.mxu0 0
        %761 = vmatpush1.bf16.msra.mxu0 %v624
        %762 = vmatprep.mubr.bf16.mxu0 %v392
        %763 = vmatmul.mubr.bf16.gmra.mrb[0].mxu0 %v391
        %v764 = vpop.f32.mrb[0].mxu0
        %v765 = vadd.f32 %v724, %v764
        %v766 = vpop.f32.mrb[0].mxu0
        %v767 = vpop.f32.mrb[0].mxu0
        %v768 = vadd.f32 %v727, %v767
        %v769 = vpop.f32.mrb[0].mxu0
        %770 = vdwg.mxu0
        %771 = vmatprep.subr.bf16.mxu0 0
        %772 = vmatpush1.bf16.msra.mxu0 %v625
        %773 = vmatprep.subr.bf16.mxu0 0
        %774 = vmatpush1.bf16.msra.mxu0 %v626
        %775 = vmatprep.subr.bf16.mxu0 0
        %776 = vmatpush1.bf16.msra.mxu0 %v627
        %777 = vmatprep.subr.bf16.mxu0 0
        %778 = vmatpush1.bf16.msra.mxu0 %v628
        %779 = vmatprep.subr.bf16.mxu0 0
        %780 = vmatpush1.bf16.msra.mxu0 %v629
        %781 = vmatprep.subr.bf16.mxu0 0
        %782 = vmatpush1.bf16.msra.mxu0 %v630
        %783 = vmatprep.subr.bf16.mxu0 0
        %784 = vmatpush1.bf16.msra.mxu0 %v631
        %785 = vmatprep.subr.bf16.mxu0 0
        %786 = vmatpush1.bf16.msra.mxu0 %v632
        %787 = vmatprep.subr.bf16.mxu0 0
        %788 = vmatpush1.bf16.msra.mxu0 %v633
        %789 = vmatprep.subr.bf16.mxu0 0
        %790 = vmatpush1.bf16.msra.mxu0 %v634
        %791 = vmatprep.subr.bf16.mxu0 0
        %792 = vmatpush1.bf16.msra.mxu0 %v635
        %793 = vmatprep.subr.bf16.mxu0 0
        %794 = vmatpush1.bf16.msra.mxu0 %v636
        %795 = vmatprep.subr.bf16.mxu0 0
        %796 = vmatpush1.bf16.msra.mxu0 %v637
        %797 = vmatprep.subr.bf16.mxu0 0
        %798 = vmatpush1.bf16.msra.mxu0 %v638
        %799 = vmatprep.subr.bf16.mxu0 0
        %800 = vmatpush1.bf16.msra.mxu0 %v639
        %801 = vmatprep.subr.bf16.mxu0 0
        %802 = vmatpush1.bf16.msra.mxu0 %v640
        %803 = vmatprep.mubr.bf16.mxu0 %v394
        %804 = vmatmul.mubr.bf16.gmra.mrb[0].mxu0 %v393
        %v805 = vpop.f32.mrb[0].mxu0
        %v806 = vadd.f32 %v765, %v805
        %v807 = vpop.f32.mrb[0].mxu0
        %v808 = vpop.f32.mrb[0].mxu0
        %v809 = vadd.f32 %v768, %v808
        %v810 = vpop.f32.mrb[0].mxu0
        %811 = vdwg.mxu0
        %812 = vadd.xlane.f32.xlu0 %v806
        %v813 = vpop.xlane.xlu0 %812
        %814 = vadd.xlane.f32.xlu0 %v809
        %v815 = vpop.xlane.xlu0 %814
        %v816 = vrcp.pop 128.0
        %v817 = vmul.f32 %v813, %v816
        %v818 = vmul.f32 %v815, %v816
        %v819 = vmul.f32 %v806, %v806
        %v820 = vmul.f32 %v809, %v809
        %821 = vadd.xlane.f32.xlu0 %v819
        %v822 = vpop.xlane.xlu0 %821
        %823 = vadd.xlane.f32.xlu0 %v820
        %v824 = vpop.xlane.xlu0 %823
        %v825 = vmul.f32 %v822, %v816
        %v826 = vmul.f32 %v824, %v816
        %v827 = vmul.f32 %v817, %v817
        %v828 = vmul.f32 %v818, %v818
        %v829 = vsub.f32 %v825, %v827
        %v830 = vsub.f32 %v826, %v828
        %v831 = vmax.f32 %v829, 0.0
        %v832 = vmax.f32 %v830, 0.0
        %v833 = vsub.f32 %v806, %v817
        %v834 = vsub.f32 %v809, %v818
        %v835 = vadd.f32 %v831, 1e-05
        %v836 = vadd.f32 %v832, 1e-05
        %v837 = vrsqrt.pop %v835
        %v838 = vrsqrt.pop %v836
        %v839 = vmul.f32 %v833, %v837
        %v840 = vmul.f32 %v834, %v838
        %v841 = vld [vmem:[%s3] sm:$0x1]
        %v843 = vlaneseq
        %v844 = vshrl.u32 %v843, 7
        %v845 = vsub.s32 0, %v844
        %v846 = vrot.slane %v841, %v845
        %v848 = vmul.f32 %v839, %v846
        %v849 = vmul.f32 %v840, %v846
        %v850 = vld [vmem:[%s4] sm:$0x1]
        %v852 = vlaneseq
        %v853 = vshrl.u32 %v852, 7
        %v854 = vsub.s32 0, %v853
        %v855 = vrot.slane %v850, %v854
        %v857 = vadd.f32 %v848, %v855
        %v858 = vadd.f32 %v849, %v855
        %v859 = vmul.f32 %v857, 0.5
        %v860 = vmul.f32 %v858, 0.5
        %v861 = vmul.f32 %v857, 0.044715
        %v862 = vmul.f32 %v858, 0.044715
        %v863 = vmul.f32 %v861, %v857
        %v864 = vmul.f32 %v862, %v858
        %v865 = vmul.f32 %v863, %v857
        %v866 = vmul.f32 %v864, %v858
        %v867 = vadd.f32 %v857, %v865
        %v868 = vadd.f32 %v858, %v866
        %v869 = vmul.f32 %v867, 0.7978846
        %v870 = vmul.f32 %v868, 0.7978846
        %v871 = vtanh.pop %v869
        %v872 = vtanh.pop %v870
        %v873 = vadd.f32 %v871, 1.0
        %v874 = vadd.f32 %v872, 1.0
        %v875 = vmul.f32 %v859, %v873
        %v876 = vmul.f32 %v860, %v874
        %v877 = vpack.c.bf16 %v876, %v875
        %v879 = vunpack.c.l.b16 %v877
        %v880 = vunpack.c.h.b16 %v877
        %v881 = vpack.c.b16 %v879, %v879
        %v882 = vpack.c.b16 %v880, %v880
        %885 = vst [vmem:[%s258] sm:$0xf] %v881
        %886 = vst [vmem:[%s258 + $0x4] sm:$0xf] %v882
        %s887 = sand.u32 %s141, 1
        %s888 = scalar_lea.sflag [#allocation4], %s887
        %s889 = sand.u32 %s141, 1
        %s890 = smul.addr %s889, 8
        %s891 = scalar_lea.vmem [#allocation7], %s890
        // Predicated region
        $region49: #{tpu_custom_call.1} parent=39 // pred_check
          %p892 = pneg %p151
        $region50: #{tpu_custom_call.1} parent=39 // pred_check_branch
          %894 = sbr.rel (%p892) target = $region52
        $region51: #{tpu_custom_call.1} parent=39 // pred_region
          %s895 = smul.u32 2, %s23
          %s897 = ssub.s32 128, 128
          %898 = vsyncadd %s888, %s897
          %s899 = smul.addr %s895, 64
          %s900 = scalar_lea.hbm %s5, %s899
          %s901 = sshll.u32 %s891, 4
          %s902 = int_to_ptr.vmem [resolvable:$true] %s901
          %907 = dma.vmem_to_hbm [thread:$0]  %s902, 128, %s900, %s888, 64, 64, 4
        $region52: #{tpu_custom_call.1} parent=39 // pred_fallthru
          _
      $region40: #{tpu_custom_call.1} parent=5 // pred_fallthru
        _
      %p908 = scmp.le.s32.totalorder 2, %s18
      // Predicated region
      $region53: #{tpu_custom_call.1} parent=5 // pred_check
        %p909 = pneg %p908
      $region54: #{tpu_custom_call.1} parent=5 // pred_check_branch
        %911 = sbr.rel (%p909) target = $region56
      $region55: #{tpu_custom_call.1} parent=5 // pred_region
        %s912 = ssub.s32 %s18, 2
        // Predicated region
        $region57: #{tpu_custom_call.1} parent=55 // pred_check
          %p913 = pneg %p157
        $region58: #{tpu_custom_call.1} parent=55 // pred_check_branch
          %915 = sbr.rel (%p913) target = $region60
        $region59: #{tpu_custom_call.1} parent=55 // pred_region
          %s916 = sand.u32 %s142, 1
          %s917 = scalar_lea.sflag [#allocation4], %s916
          %s918 = sand.u32 %s142, 1
          %s919 = smul.addr %s918, 8
          %s920 = scalar_lea.vmem [#allocation7], %s919
          %921 = dma.done %s917, 128
        $region60: #{tpu_custom_call.1} parent=55 // pred_fallthru
          _
      $region56: #{tpu_custom_call.1} parent=5 // pred_fallthru
        _
    $region6: #{tpu_custom_call.1} parent=1 // loop_footer
      %s22 = sadd.s32 1, %s18
    $region7: #{tpu_custom_call.1} parent=1 // loop_footer_branch
      %17 = sbr.rel target = $region3
    $region8: #{tpu_custom_call.1} parent=1 // loop_exit
      _
    %922 = vsyncpa [#allocation3], 1
    %s923 = scalar_lea.sflag [#allocation3], 1
    %924 = vsyncpa %s923, 1
    %925 = vsyncpa [#allocation6], 1
    %926 = vsyncpa [#allocation4], 1
    %s927 = scalar_lea.sflag [#allocation4], 1
    %928 = vsyncpa %s927, 1

</llo_original>
